<compile_context>
chip_gen: v7x
topology: tpu7x:2x2x1
jax: 0.10.0
libtpu: 0.0.40
codegen_flags: <defaults>
</compile_context>

<pallas_src>
import numpy as np
import jax
import jax.numpy as jnp
from jax import lax
from jax.experimental import pallas as pl
from jax.experimental.pallas import tpu as pltpu


# ---------------------------------------------------------------------------
# Chip-aware budgets
# ---------------------------------------------------------------------------
def _vmem_capacity_bytes():
    try:
        return int(pltpu.get_tpu_info().vmem_capacity_bytes)
    except Exception:
        return 64 * 1024 * 1024  # conservative (v7x-sized) if query unavailable


_BIG_VMEM = _vmem_capacity_bytes() >= 100 * 1024 * 1024   # v5e / v6e: 128 MiB
_BLOCK_BUDGET = (4 if _BIG_VMEM else 2) * 1024 * 1024      # per-input block budget
_VMEM_LIMIT = (64 if _BIG_VMEM else 32) * 1024 * 1024      # scoped VMEM limit

_LANE = 512                      # lane-dense last dim for elementwise kernels (4*128)
_XLA_LEVEL_MAX_AREA = 32 * 32    # pyramid levels at/below this area run in plain XLA


def _round_up(x, m):
    return ((x + m - 1) // m) * m


# ---------------------------------------------------------------------------
# Interpolation matrices (align_corners=True bilinear), built once in host numpy.
# ---------------------------------------------------------------------------
def bilinear_matrix(out_size: int, in_size: int) -> np.ndarray:
    W = np.zeros((out_size, in_size), dtype=np.float32)
    if out_size == 1:
        W[0, 0] = 1.0
        return W
    for i in range(out_size):
        src = i * (in_size - 1) / (out_size - 1)
        i0 = min(int(np.floor(src)), in_size - 1)
        i1 = min(i0 + 1, in_size - 1)
        w1 = src - i0
        W[i, i0] += 1.0 - w1
        W[i, i1] += w1
    return W


# ---------------------------------------------------------------------------
# Pallas kernels
# ---------------------------------------------------------------------------
def _pyr_level_kernel(y_ref, t_ref, wh_ref, wwtb_ref, out_ref):
    """Partial of sum |y - bilinear(t)| for one (batch, Hy-tile) block.

    y_ref   : (1, thy, C*Wy)   NHCW-flattened output-pyramid tile
    t_ref   : (1, Ht, C*Wt)    NHCW-flattened target (resident across Hy-tiles)
    wh_ref  : (thy, Ht)        H-direction interpolation rows for this tile
    wwtb_ref: (C*Wt, C*Wy)     block-diagonal W-direction interpolation (ww^T per channel)
    out_ref : (1, 1, 8, 128)   lane-dense scalar partial, written exactly once
    """
    t2 = t_ref[0].astype(jnp.float32)                              # (Ht, C*Wt)
    # H-direction interpolation: one MXU matmul, lane-dense N = C*Wt.
    uh = jnp.dot(wh_ref[...], t2, preferred_element_type=jnp.float32)     # (thy, C*Wt)
    # W-direction interpolation (per channel) via block-diagonal matrix: one matmul.
    interp = jnp.dot(uh, wwtb_ref[...], preferred_element_type=jnp.float32)  # (thy, C*Wy)
    d = jnp.abs(y_ref[0].astype(jnp.float32) - interp)
    out_ref[...] = jnp.broadcast_to(jnp.sum(d), out_ref.shape)


def _l1_partial_kernel(y_ref, t_ref, out_ref):
    """Partial sum |y - t| over one lane-dense (TR, LANE) tile (zero-padded tails cancel)."""
    d = jnp.abs(y_ref[...].astype(jnp.float32) - t_ref[...].astype(jnp.float32))
    out_ref[...] = jnp.broadcast_to(jnp.sum(d), out_ref.shape)


def _make_logsig_kernel(total, tr, lane):
    """Partial sum of log(sigmoid(x) + 1e-9) over a (tr, lane) tile, masking padded tail."""
    def kernel(p_ref, out_ref):
        x = p_ref[...].astype(jnp.float32)
        # Keep the exact PyTorch epsilon semantics log(sigmoid(x) + 1e-9); the divide
        # is VPU work that stays hidden under memory on v6e/v7x.
        sig = 1.0 / (1.0 + jnp.exp(-x))
        val = jnp.log(sig + 1e-9)
        base = pl.program_id(0) * (tr * lane)
        idx = (base
               + lax.broadcasted_iota(jnp.int32, (tr, lane), 0) * lane
               + lax.broadcasted_iota(jnp.int32, (tr, lane), 1))
        val = jnp.where(idx < total, val, 0.0)
        out_ref[...] = jnp.broadcast_to(jnp.sum(val), out_ref.shape)
    return kernel


# ---------------------------------------------------------------------------
# Tiling helpers (padding-aware: (8,128) vreg tiling inflates small dims)
# ---------------------------------------------------------------------------
def _padded_block_bytes(rows, lanes, itemsize):
    return _round_up(max(rows, 1), 8) * _round_up(max(lanes, 1), 128) * itemsize


def _choose_pyr_h_tile(Hy, lane_elems, itemsize, budget_bytes):
    """Largest Hy-tile (divisor of Hy, multiple of 8 unless == Hy) whose padded block fits."""
    if _padded_block_bytes(Hy, lane_elems, itemsize) <= budget_bytes:
        return Hy
    cands = [d for d in range(8, Hy, 8) if Hy % d == 0]
    fitting = [d for d in cands if _padded_block_bytes(d, lane_elems, itemsize) <= budget_bytes]
    if fitting:
        return max(fitting)
    # No aligned divisor fits: use the smallest aligned divisor (minimum footprint)
    # and rely on the explicit vmem limit; full Hy only if no aligned divisor exists.
    return min(cands) if cands else Hy


def _plan_lane_dense(total_elems, itemsize):
    """Plan a (rows, _LANE) layout: rows padded to a multiple of the row tile."""
    max_rows = max(8, (_BLOCK_BUDGET // (_LANE * itemsize)) // 8 * 8)
    rows_needed = -(-total_elems // _LANE)
    tr = min(_round_up(rows_needed, 8), max_rows)
    rows = _round_up(rows_needed, tr)
    return rows, tr


def _to_lane_dense(x, rows):
    flat = jnp.reshape(x, (-1,))
    pad = rows * _LANE - flat.shape[0]
    if pad:
        flat = jnp.pad(flat, (0, pad))
    return flat.reshape(rows, _LANE)


# ---------------------------------------------------------------------------
# Pallas wrappers
# ---------------------------------------------------------------------------
def pyr_level_l1_interp(y, t):
    """sum over (N,C,Hy,Wy) of |y - bilinear_resize_align_corners(t)|, in-kernel."""
    N, C, Hy, Wy = y.shape
    _, _, Ht, Wt = t.shape
    CWy, CWt = C * Wy, C * Wt

    wh = jnp.asarray(bilinear_matrix(Hy, Ht))                               # (Hy, Ht)
    ww = bilinear_matrix(Wy, Wt)                                            # (Wy, Wt)
    wwt_blk = jnp.asarray(np.kron(np.eye(C, dtype=np.float32),
                                  np.ascontiguousarray(ww.T)))              # (C*Wt, C*Wy)

    # NHCW flatten: lane-dense last dim C*W, no in-kernel transposes/reshapes.
    y2 = jnp.transpose(y, (0, 2, 1, 3)).reshape(N, Hy, CWy)
    t2 = jnp.transpose(t, (0, 2, 1, 3)).reshape(N, Ht, CWt)

    # Padding-aware VMEM accounting for the Hy-tile of y (t + ww stay resident).
    t_bytes = _padded_block_bytes(Ht, CWt, t.dtype.itemsize)
    ww_bytes = _padded_block_bytes(CWt, CWy, 4)
    avail = max(_VMEM_LIMIT // 2 - 2 * t_bytes - ww_bytes, 512 * 1024)
    y_budget = min(avail // 2, _BLOCK_BUDGET)
    thy = _choose_pyr_h_tile(Hy, CWy, y.dtype.itemsize, y_budget)
    nh = Hy // thy

    out = pl.pallas_call(
        _pyr_level_kernel,
        out_shape=jax.ShapeDtypeStruct((N, nh, 8, 128), jnp.float32),
        grid_spec=pltpu.PrefetchScalarGridSpec(
            num_scalar_prefetch=0,
            grid=(N, nh),
            in_specs=[
                pl.BlockSpec((1, thy, CWy), lambda n, h: (n, h, 0)),
                pl.BlockSpec((1, Ht, CWt), lambda n, h: (n, 0, 0)),
                pl.BlockSpec((thy, Ht), lambda n, h: (h, 0)),
                pl.BlockSpec((CWt, CWy), lambda n, h: (0, 0)),
            ],
            out_specs=pl.BlockSpec((1, 1, 8, 128), lambda n, h: (n, h, 0, 0)),
        ),
        compiler_params=pltpu.CompilerParams(
            dimension_semantics=("parallel", "parallel"),
            vmem_limit_bytes=_VMEM_LIMIT),
    )(y2, t2, wh, wwt_blk)
    return jnp.sum(out[:, :, 0, 0])


def l1_sum(y, t):
    """sum |y - t| with lane-dense (rows, 512) tiling; zero padding cancels in the diff."""
    total = int(np.prod(y.shape))
    rows, tr = _plan_lane_dense(total, y.dtype.itemsize)
    y2 = _to_lane_dense(y, rows)
    t2 = _to_lane_dense(t, rows)
    grid = rows // tr
    out = pl.pallas_call(
        _l1_partial_kernel,
        out_shape=jax.ShapeDtypeStruct((grid, 8, 128), jnp.float32),
        grid_spec=pltpu.PrefetchScalarGridSpec(
            num_scalar_prefetch=0,
            grid=(grid,),
            in_specs=[
                pl.BlockSpec((tr, _LANE), lambda g: (g, 0)),
                pl.BlockSpec((tr, _LANE), lambda g: (g, 0)),
            ],
            out_specs=pl.BlockSpec((1, 8, 128), lambda g: (g, 0, 0)),
        ),
        compiler_params=pltpu.CompilerParams(
            dimension_semantics=("parallel",),
            vmem_limit_bytes=_VMEM_LIMIT),
    )(y2, t2)
    return jnp.sum(out[:, 0, 0])


def logsig_sum(p):
    """sum log(sigmoid(p) + 1e-9) with lane-dense tiling; padded tail masked in-kernel."""
    total = int(np.prod(p.shape))
    rows, tr = _plan_lane_dense(total, p.dtype.itemsize)
    p2 = _to_lane_dense(p, rows)
    grid = rows // tr
    out = pl.pallas_call(
        _make_logsig_kernel(total, tr, _LANE),
        out_shape=jax.ShapeDtypeStruct((grid, 8, 128), jnp.float32),
        grid_spec=pltpu.PrefetchScalarGridSpec(
            num_scalar_prefetch=0,
            grid=(grid,),
            in_specs=[pl.BlockSpec((tr, _LANE), lambda g: (g, 0))],
            out_specs=pl.BlockSpec((1, 8, 128), lambda g: (g, 0, 0)),
        ),
        compiler_params=pltpu.CompilerParams(
            dimension_semantics=("parallel",),
            vmem_limit_bytes=_VMEM_LIMIT),
    )(p2)
    return jnp.sum(out[:, 0, 0])


# ---------------------------------------------------------------------------
# Genloss forward (matches PyTorch semantics / return structure)
# ---------------------------------------------------------------------------
def genloss_forward(y_list, t_list, p_y=None, withoutadvloss=False,
                    size=256, pyr_weight=1.0, rec_weight=1.0, adv_weight=1.0):
    n = len(y_list)

    # PyrLoss: sum over levels 0..n-2 of w * 2^(n-m-2) * L1_sum(y, interp(t)) / N
    # (kept shape (1,) to match torch.zeros(1) in the reference module)
    pyr_loss = jnp.zeros((1,), jnp.float32)
    for m in range(n - 1):
        N, C, Hy, Wy = y_list[m].shape
        _, _, Ht, Wt = t_list[m].shape
        w = pyr_weight * (2.0 ** (n - m - 2)) / N
        if Hy * Wy <= _XLA_LEVEL_MAX_AREA:
            # Tiny level: pallas_call launch + per-step overhead dominates; plain XLA
            # fuses einsum+abs+sum better at this size.
            wh = jnp.asarray(bilinear_matrix(Hy, Ht))
            ww = jnp.asarray(bilinear_matrix(Wy, Wt))
            interp = jnp.einsum("oi,ncij,pj->ncop", wh, t_list[m], ww)
            level_l1 = jnp.sum(jnp.abs(y_list[m] - interp))
        else:
            level_l1 = pyr_level_l1_interp(y_list[m], t_list[m])
        pyr_loss = pyr_loss + w * level_l1

    # RecLoss: w * L1_sum(y[-1], t[-1]) / N
    rec_loss = rec_weight * l1_sum(y_list[-1], t_list[-1]) / y_list[-1].shape[0]

    if withoutadvloss:
        loss = pyr_loss + rec_loss
        return rec_loss, pyr_loss, loss

    # AdvLoss: -w * 12 * size^2 * mean(log(sigmoid(p_y) + 1e-9))
    s = logsig_sum(p_y)
    mean_logsig = s / float(np.prod(p_y.shape))
    adv_loss = -adv_weight * 12.0 * size * size * mean_logsig

    loss = pyr_loss + rec_loss + adv_loss
    return rec_loss, pyr_loss, adv_loss, loss


# ---------------------------------------------------------------------------
# Pure-JAX reference (same interpolation matrices) for a sanity check
# ---------------------------------------------------------------------------
def genloss_reference(y_list, t_list, p_y, size, pyr_w, rec_w, adv_w):
    n = len(y_list)
    pyr = jnp.zeros((1,), jnp.float32)
    for m in range(n - 1):
        Hy, Wy = y_list[m].shape[2], y_list[m].shape[3]
        Ht, Wt = t_list[m].shape[2], t_list[m].shape[3]
        wh = jnp.asarray(bilinear_matrix(Hy, Ht))
        ww = jnp.asarray(bilinear_matrix(Wy, Wt))
        interp = jnp.einsum("oi,ncij,pj->ncop", wh, t_list[m], ww)
        l1 = jnp.sum(jnp.abs(y_list[m] - interp))
        pyr = pyr + pyr_w * (2.0 ** (n - m - 2)) * l1 / y_list[m].shape[0]
    rec = rec_w * jnp.sum(jnp.abs(y_list[-1] - t_list[-1])) / y_list[-1].shape[0]
    sig = 1.0 / (1.0 + jnp.exp(-p_y))
    adv = -adv_w * 12.0 * size * size * jnp.mean(jnp.log(sig + 1e-9))
    return rec, pyr, adv, pyr + rec + adv


if __name__ == "__main__":
    key = jax.random.PRNGKey(0)
    k = jax.random.split(key, 8)

    N, C = 2, 3
    SIZE = 128  # AdvLoss "size" parameter chosen to match the full-resolution level

    # 3-level output pyramid (NCHW), targets at full resolution (exercises bilinear
    # resize).  Level 0 (32x32) takes the plain-XLA small-level path; level 1 (64x64)
    # and RecLoss (128x128) go through the Pallas kernels; p_y has a ragged tail to
    # exercise the in-kernel mask of the lane-dense log-sigmoid kernel.
    y_list = [
        jax.random.normal(k[0], (N, C, 32, 32), jnp.float32),
        jax.random.normal(k[1], (N, C, 64, 64), jnp.float32),
        jax.random.normal(k[2], (N, C, 128, 128), jnp.float32),
    ]
    t_list = [
        jax.random.normal(k[3], (N, C, 128, 128), jnp.float32),
        jax.random.normal(k[4], (N, C, 128, 128), jnp.float32),
        jax.random.normal(k[5], (N, C, 128, 128), jnp.float32),
    ]
    p_y = jax.random.normal(k[6], (N, 1, 30, 30), jnp.float32)

    rec_loss, pyr_loss, adv_loss, loss = genloss_forward(
        y_list, t_list, p_y, withoutadvloss=False,
        size=SIZE, pyr_weight=1.0, rec_weight=1.0, adv_weight=1.0)
    jax.block_until_ready((rec_loss, pyr_loss, adv_loss, loss))

    # sanity check against pure-JAX reference
    r_rec, r_pyr, r_adv, r_loss = genloss_reference(
        y_list, t_list, p_y, SIZE, 1.0, 1.0, 1.0)
    assert np.allclose(np.asarray(rec_loss), np.asarray(r_rec), rtol=5e-4, atol=1e-2)
    assert np.allclose(np.asarray(pyr_loss), np.asarray(r_pyr), rtol=5e-4, atol=1e-2)
    assert np.allclose(np.asarray(adv_loss), np.asarray(r_adv), rtol=5e-4, atol=1e-2)
    assert np.allclose(np.asarray(loss), np.asarray(r_loss), rtol=5e-4, atol=1e-2)

    # also exercise the withoutadvloss branch
    rec2, pyr2, loss2 = genloss_forward(y_list, t_list, withoutadvloss=True, size=SIZE)
    jax.block_until_ready((rec2, pyr2, loss2))

    print("KERNEL_OK")
</pallas_src>

<mosaic_0001>
module attributes {stable_mosaic.version = 11 : i64} {
  func.func @_pyr_level_kernel(%arg0: i32, %arg1: i32, %arg2: memref<1x64x192xf32, #tpu.memory_space<vmem>>, %arg3: memref<1x128x384xf32, #tpu.memory_space<vmem>>, %arg4: memref<64x128xf32, #tpu.memory_space<vmem>>, %arg5: memref<384x192xf32, #tpu.memory_space<vmem>>, %arg6: memref<1x1x8x128xf32, #tpu.memory_space<vmem>>) attributes {dimension_semantics = [#tpu.dimension_semantics<parallel>, #tpu.dimension_semantics<parallel>], iteration_bounds = array<i64: 2, 1>, scalar_prefetch = 0 : i64, scratch_operands = 0 : i64, tpu.core_type = #tpu.core_type<tc>, window_params = [{transform_indices = @transform_0, window_bounds = array<i64: 1, 64, 192>}, {transform_indices = @transform_1, window_bounds = array<i64: 1, 128, 384>}, {transform_indices = @transform_2, window_bounds = array<i64: 64, 128>}, {pipeline_mode = #tpu.pipeline_mode<synchronous>, transform_indices = @transform_3, window_bounds = array<i64: 384, 192>}, {transform_indices = @transform_4, window_bounds = array<i64: 1, 1, 8, 128>}]} {
    %c0 = arith.constant 0 : index
    %c0_0 = arith.constant 0 : index
    %c0_1 = arith.constant 0 : index
    %0 = vector.load %arg3[%c0, %c0_0, %c0_1] : memref<1x128x384xf32, #tpu.memory_space<vmem>>, vector<1x128x384xf32>
    %1 = vector.shape_cast %0 : vector<1x128x384xf32> to vector<128x384xf32>
    %c0_2 = arith.constant 0 : index
    %c0_3 = arith.constant 0 : index
    %2 = vector.load %arg4[%c0_2, %c0_3] : memref<64x128xf32, #tpu.memory_space<vmem>>, vector<64x128xf32>
    %cst = arith.constant dense<0.000000e+00> : vector<64x384xf32>
    %3 = tpu.matmul %2, %1, %cst {dimension_numbers = #tpu.dot_dimension_numbers<[1], [0], [0], [1], [0, 0, 1, 1], [], []>} : vector<64x128xf32>, vector<128x384xf32>, vector<64x384xf32> -> vector<64x384xf32>
    %c0_4 = arith.constant 0 : index
    %c0_5 = arith.constant 0 : index
    %4 = vector.load %arg5[%c0_4, %c0_5] : memref<384x192xf32, #tpu.memory_space<vmem>>, vector<384x192xf32>
    %cst_6 = arith.constant dense<0.000000e+00> : vector<64x192xf32>
    %5 = tpu.matmul %3, %4, %cst_6 {dimension_numbers = #tpu.dot_dimension_numbers<[1], [0], [0], [1], [0, 0, 1, 1], [], []>} : vector<64x384xf32>, vector<384x192xf32>, vector<64x192xf32> -> vector<64x192xf32>
    %c0_7 = arith.constant 0 : index
    %c0_8 = arith.constant 0 : index
    %c0_9 = arith.constant 0 : index
    %6 = vector.load %arg2[%c0_7, %c0_8, %c0_9] : memref<1x64x192xf32, #tpu.memory_space<vmem>>, vector<1x64x192xf32>
    %7 = vector.shape_cast %6 : vector<1x64x192xf32> to vector<64x192xf32>
    %8 = arith.subf %7, %5 : vector<64x192xf32>
    %9 = math.absf %8 : vector<64x192xf32>
    %10 = vector.shape_cast %9 : vector<64x192xf32> to vector<1x64x192xf32>
    %cst_10 = arith.constant dense<0.000000e+00> : vector<1xf32>
    %11 = vector.multi_reduction <add>, %10, %cst_10 [1, 2] : vector<1x64x192xf32> to vector<1xf32>
    %12 = vector.shape_cast %11 : vector<1xf32> to vector<1x1x1xf32>
    %13 = vector.extract %12[0, 0, 0] : f32 from vector<1x1x1xf32>
    %14 = vector.broadcast %13 : f32 to vector<1x1x8x128xf32>
    %c0_11 = arith.constant 0 : index
    %c0_12 = arith.constant 0 : index
    %c0_13 = arith.constant 0 : index
    %c0_14 = arith.constant 0 : index
    %15 = vector.load %arg6[%c0_11, %c0_12, %c0_13, %c0_14] : memref<1x1x8x128xf32, #tpu.memory_space<vmem>>, vector<1x1x8x128xf32>
    tpu.vector_store %arg6[%c0_11, %c0_12, %c0_13, %c0_14], %14 {strides = array<i32>} : memref<1x1x8x128xf32, #tpu.memory_space<vmem>>, vector<1x1x8x128xf32>,
    return
  }
  func.func @transform_0(%arg0: i32, %arg1: i32) -> (i32, i32, i32) {
    %c0_i32 = arith.constant 0 : i32
    %c0_i32_0 = arith.constant 0 : i32
    return %arg0, %arg1, %c0_i32 : i32, i32, i32
  }
  func.func @transform_1(%arg0: i32, %arg1: i32) -> (i32, i32, i32) {
    %c0_i32 = arith.constant 0 : i32
    %c0_i32_0 = arith.constant 0 : i32
    %c0_i32_1 = arith.constant 0 : i32
    return %arg0, %c0_i32, %c0_i32_0 : i32, i32, i32
  }
  func.func @transform_2(%arg0: i32, %arg1: i32) -> (i32, i32) {
    %c0_i32 = arith.constant 0 : i32
    %c0_i32_0 = arith.constant 0 : i32
    return %arg1, %c0_i32 : i32, i32
  }
  func.func @transform_3(%arg0: i32, %arg1: i32) -> (i32, i32) {
    %c0_i32 = arith.constant 0 : i32
    %c0_i32_0 = arith.constant 0 : i32
    %c0_i32_1 = arith.constant 0 : i32
    return %c0_i32, %c0_i32_0 : i32, i32
  }
  func.func @transform_4(%arg0: i32, %arg1: i32) -> (i32, i32, i32, i32) {
    %c0_i32 = arith.constant 0 : i32
    %c0_i32_0 = arith.constant 0 : i32
    %c0_i32_1 = arith.constant 0 : i32
    return %arg0, %arg1, %c0_i32, %c0_i32_0 : i32, i32, i32, i32
  }
}

</mosaic_0001>

<llo_original>
// kernel: tpu_custom_call.1
$region0: #{tpu_custom_call.1}
  #allocation0 [shape = 'u32[]', space=smem, size = 0x4, offset = 0x4, fixed_abs, tag = 'smem constant byte address 0x4 - core index']
  #allocation1 [shape = 'u32[144,128]{1,0:T(1,128)}', space=vmem, size = 0x12000, scoped, tag = 'internal scratch']
  %s0 = inlined_call_operand.vmem [shape: f32[2,64,192], index: 0, kind: input, shape index: {}]
  %s1 = inlined_call_operand.vmem [shape: f32[2,128,384], index: 1, kind: input, shape index: {}]
  %s2 = inlined_call_operand.vmem [shape: f32[64,128], index: 2, kind: input, shape index: {}]
  %s3 = inlined_call_operand.vmem [shape: f32[384,192], index: 3, kind: input, shape index: {}]
  %s4 = inlined_call_operand.hbm [shape: f32[2,1,8,128], index: 4, kind: output, shape index: {}]
  %s5 = sld [smem:[#allocation0]]
  $region49: #{tpu_custom_call.1} parent=0
    _
  %s7 = ssub.s32 1, %s5
  %s8 = scalar_select 0, %s7, %s5
  $region1: #{tpu_custom_call.1} parent=0
    #allocation2 [shape = 'u8[8192]{0}', space=vmem, size = 0x2000, scoped, tag = 'output window, operand 0']
    #allocation3 [shape = 's32[2]{0}', space=sflag, size = 0x8, scoped, tag = 'scoped memory for tpu_custom_call.1']
    %9 = vsyncpa [#allocation3], 0
    %s10 = scalar_lea.sflag [#allocation3], 1
    %11 = vsyncpa %s10, 0
    loop: start=0, step=1, limit=4
    $region2: #{tpu_custom_call.1} parent=1 // loop_pre_header
      _
    $region3: #{tpu_custom_call.1} parent=1 // loop_header
      %s13 = sphi 0, %s17
      %p14 = scmp.ge.s32.totalorder %s13, 4
      %s20 = sphi 0, %s32
      %s21 = sphi 0, %s28
      %s22 = sphi 0, %s20
      %s23 = sphi 0, %s21
      %s24 = sphi 0, %s22
      %s25 = sphi 0, %s23
      %s37 = sphi 0, %s39
      %s40 = sphi 0, %s37
      %s41 = sphi 0, %s40
      %s57 = sphi 0, %s41
      %s63 = sphi 0, %s65
      %s66 = sphi 0, %s63
      %s67 = sphi 0, %s66
      %s83 = sphi 0, %s67
      %s89 = sphi 0, %s91
      %s92 = sphi 0, %s89
      %s93 = sphi 0, %s92
      %s109 = sphi 0, %s93
      %s113 = sphi 0, %s113
      %s115 = sphi 0, %s113
      %s116 = sphi 0, %s115
      %s130 = sphi 0, %s116
      %s138 = sphi 0, %s140
      %s141 = sphi 0, %s138
      %s142 = sphi 0, %s141
      %s158 = sphi 0, %s142
    $region4: #{tpu_custom_call.1} parent=1 // loop_header_branch
      %16 = sbr.rel (%p14) target = $region8
    $region5: #{tpu_custom_call.1} parent=1 // loop_body
      %s18 = ssub.s32 %s13, 1
      %s19 = ssub.s32 %s13, 2
      %s26 = sadd.s32 1, %s21
      %p27 = scmp.ge.s32.totalorder %s26, 1
      %s28 = scalar_select %p27, 0, %s26
      %s29 = sadd.s32 1, %s20
      %s30 = scalar_select %p27, %s29, %s20
      %p31 = scmp.ge.s32.totalorder %s30, 2
      %s32 = scalar_select %p31, 0, %s30
      %s33 = ssub.s32 %s20, %s32
      %s34 = ssub.s32 %s21, %s28
      %s35 = sor.u32 %s33, %s34
      %p36 = scmp.eq.s32.totalorder %s35, 0
      %s38 = sadd.s32 %s37, 1
      %s39 = scalar_select %p36, %s37, %s38
      %p42 = pneg %p36
      %p43 = scmp.eq.s32.totalorder %s13, 1
      %p44 = por %p42, %p43
      %p45 = scmp.ne.s32.totalorder %s37, %s40
      %p46 = scmp.eq.s32.totalorder %s13, 0
      %p47 = por %p45, %p46
      %p48 = scmp.ne.s32.totalorder %s37, %s40
      %p49 = scmp.eq.s32.totalorder %s18, 1
      %p50 = por %p48, %p49
      %p51 = scmp.ne.s32.totalorder %s40, %s41
      %p52 = scmp.eq.s32.totalorder %s18, 0
      %p53 = por %p51, %p52
      %p54 = scmp.ne.s32.totalorder %s40, %s41
      %p55 = scmp.eq.s32.totalorder %s19, 1
      %p56 = por %p54, %p55
      %p58 = scmp.ne.s32.totalorder %s41, %s57
      %p59 = scmp.eq.s32.totalorder %s19, 0
      %p60 = por %p58, %p59
      %s61 = ssub.s32 %s20, %s32
      %p62 = scmp.eq.s32.totalorder %s61, 0
      %s64 = sadd.s32 %s63, 1
      %s65 = scalar_select %p62, %s63, %s64
      %p68 = pneg %p62
      %p69 = scmp.eq.s32.totalorder %s13, 1
      %p70 = por %p68, %p69
      %p71 = scmp.ne.s32.totalorder %s63, %s66
      %p72 = scmp.eq.s32.totalorder %s13, 0
      %p73 = por %p71, %p72
      %p74 = scmp.ne.s32.totalorder %s63, %s66
      %p75 = scmp.eq.s32.totalorder %s18, 1
      %p76 = por %p74, %p75
      %p77 = scmp.ne.s32.totalorder %s66, %s67
      %p78 = scmp.eq.s32.totalorder %s18, 0
      %p79 = por %p77, %p78
      %p80 = scmp.ne.s32.totalorder %s66, %s67
      %p81 = scmp.eq.s32.totalorder %s19, 1
      %p82 = por %p80, %p81
      %p84 = scmp.ne.s32.totalorder %s67, %s83
      %p85 = scmp.eq.s32.totalorder %s19, 0
      %p86 = por %p84, %p85
      %s87 = ssub.s32 %s21, %s28
      %p88 = scmp.eq.s32.totalorder %s87, 0
      %s90 = sadd.s32 %s89, 1
      %s91 = scalar_select %p88, %s89, %s90
      %p94 = pneg %p88
      %p95 = scmp.eq.s32.totalorder %s13, 1
      %p96 = por %p94, %p95
      %p97 = scmp.ne.s32.totalorder %s89, %s92
      %p98 = scmp.eq.s32.totalorder %s13, 0
      %p99 = por %p97, %p98
      %p100 = scmp.ne.s32.totalorder %s89, %s92
      %p101 = scmp.eq.s32.totalorder %s18, 1
      %p102 = por %p100, %p101
      %p103 = scmp.ne.s32.totalorder %s92, %s93
      %p104 = scmp.eq.s32.totalorder %s18, 0
      %p105 = por %p103, %p104
      %p106 = scmp.ne.s32.totalorder %s92, %s93
      %p107 = scmp.eq.s32.totalorder %s19, 1
      %p108 = por %p106, %p107
      %p110 = scmp.ne.s32.totalorder %s93, %s109
      %p111 = scmp.eq.s32.totalorder %s19, 0
      %p112 = por %p110, %p111
      %s114 = sadd.s32 %s113, 1
      %p117 = scmp.eq.s32.totalorder %s13, 1
      %p118 = scmp.ne.s32.totalorder %s113, %s115
      %p119 = scmp.eq.s32.totalorder %s13, 0
      %p120 = por %p118, %p119
      %p121 = scmp.ne.s32.totalorder %s113, %s115
      %p122 = scmp.eq.s32.totalorder %s18, 1
      %p123 = por %p121, %p122
      %p124 = scmp.ne.s32.totalorder %s115, %s116
      %p125 = scmp.eq.s32.totalorder %s18, 0
      %p126 = por %p124, %p125
      %p127 = scmp.ne.s32.totalorder %s115, %s116
      %p128 = scmp.eq.s32.totalorder %s19, 1
      %p129 = por %p127, %p128
      %p131 = scmp.ne.s32.totalorder %s116, %s130
      %p132 = scmp.eq.s32.totalorder %s19, 0
      %p133 = por %p131, %p132
      %s134 = ssub.s32 %s20, %s32
      %s135 = ssub.s32 %s21, %s28
      %s136 = sor.u32 %s134, %s135
      %p137 = scmp.eq.s32.totalorder %s136, 0
      %s139 = sadd.s32 %s138, 1
      %s140 = scalar_select %p137, %s138, %s139
      %p143 = pneg %p137
      %p144 = scmp.eq.s32.totalorder %s13, 1
      %p145 = por %p143, %p144
      %p146 = scmp.ne.s32.totalorder %s138, %s141
      %p147 = scmp.eq.s32.totalorder %s13, 0
      %p148 = por %p146, %p147
      %p149 = scmp.ne.s32.totalorder %s138, %s141
      %p150 = scmp.eq.s32.totalorder %s18, 1
      %p151 = por %p149, %p150
      %p152 = scmp.ne.s32.totalorder %s141, %s142
      %p153 = scmp.eq.s32.totalorder %s18, 0
      %p154 = por %p152, %p153
      %p155 = scmp.ne.s32.totalorder %s141, %s142
      %p156 = scmp.eq.s32.totalorder %s19, 1
      %p157 = por %p155, %p156
      %p159 = scmp.ne.s32.totalorder %s142, %s158
      %p160 = scmp.eq.s32.totalorder %s19, 0
      %p161 = por %p159, %p160
      %p162 = scmp.le.s32.totalorder 1, %s13
      %p163 = scmp.lt.s32.totalorder %s13, 3
      %p164 = pnand %p162, %p163
      %p165 = pneg %p164
      // Predicated region
      $region9: #{tpu_custom_call.1} parent=5 // pred_check
        _
      $region10: #{tpu_custom_call.1} parent=5 // pred_check_branch
        %167 = sbr.rel (%p164) target = $region12
      $region11: #{tpu_custom_call.1} parent=5 // pred_region
        %s168 = ssub.s32 %s13, 1
        // Predicated region
        $region13: #{tpu_custom_call.1} parent=11 // pred_check
          %p169 = pneg %p105
        $region14: #{tpu_custom_call.1} parent=11 // pred_check_branch
          %171 = sbr.rel (%p169) target = $region16
        $region15: #{tpu_custom_call.1} parent=11 // pred_region
          %s172 = smul.u32 8, %s23
          %p173 = scmp.lt.s32.totalorder %s172, 7
          %s174 = scalar_select %p173, %s172, 7
          %s175 = smul.addr %s174, 8
          %s176 = scalar_lea.vmem %s2, %s175
          %s177 = smul.u32 8, %s23
        $region16: #{tpu_custom_call.1} parent=11 // pred_fallthru
          _
        // Predicated region
        $region17: #{tpu_custom_call.1} parent=11 // pred_check
          %p178 = pneg %p126
        $region18: #{tpu_custom_call.1} parent=11 // pred_check_branch
          %180 = sbr.rel (%p178) target = $region20
        $region19: #{tpu_custom_call.1} parent=11 // pred_region
          _
        $region20: #{tpu_custom_call.1} parent=11 // pred_fallthru
          _
      $region12: #{tpu_custom_call.1} parent=5 // pred_fallthru
        _
      %p181 = scmp.lt.s32.totalorder %s13, 2
      // Predicated region
      $region21: #{tpu_custom_call.1} parent=5 // pred_check
        %p182 = pneg %p181
      $region22: #{tpu_custom_call.1} parent=5 // pred_check_branch
        %184 = sbr.rel (%p182) target = $region24
      $region23: #{tpu_custom_call.1} parent=5 // pred_region
        // Predicated region
        $region25: #{tpu_custom_call.1} parent=23 // pred_check
          %p185 = pneg %p47
        $region26: #{tpu_custom_call.1} parent=23 // pred_check_branch
          %187 = sbr.rel (%p185) target = $region28
        $region27: #{tpu_custom_call.1} parent=23 // pred_region
          %s188 = smul.u32 8, %s21
          %p189 = scmp.lt.s32.totalorder %s20, 1
          %s190 = scalar_select %p189, %s20, 1
          %p191 = scmp.lt.s32.totalorder %s188, 7
          %s192 = scalar_select %p191, %s188, 7
          %s193 = smul.addr %s192, 2
          %s194 = smul.addr %s190, 16
          %s195 = sadd.s32 %s193, %s194
          %s196 = smul.addr %s195, 8
          %s197 = scalar_lea.vmem %s0, %s196
          %s198 = smul.u32 8, %s21
        $region28: #{tpu_custom_call.1} parent=23 // pred_fallthru
          _
        // Predicated region
        $region29: #{tpu_custom_call.1} parent=23 // pred_check
          %p199 = pneg %p73
        $region30: #{tpu_custom_call.1} parent=23 // pred_check_branch
          %201 = sbr.rel (%p199) target = $region32
        $region31: #{tpu_custom_call.1} parent=23 // pred_region
          %p202 = scmp.lt.s32.totalorder %s20, 1
          %s203 = scalar_select %p202, %s20, 1
          %s204 = smul.addr %s203, 48
          %s205 = smul.addr %s204, 8
          %s206 = scalar_lea.vmem %s1, %s205
        $region32: #{tpu_custom_call.1} parent=23 // pred_fallthru
          _
      $region24: #{tpu_custom_call.1} parent=5 // pred_fallthru
        _
      %p207 = scmp.le.s32.totalorder 1, %s13
      %p208 = scmp.lt.s32.totalorder %s13, 3
      %p209 = pnand %p207, %p208
      %p210 = pneg %p209
      // Predicated region
      $region33: #{tpu_custom_call.1} parent=5 // pred_check
        _
      $region34: #{tpu_custom_call.1} parent=5 // pred_check_branch
        %212 = sbr.rel (%p209) target = $region36
      $region35: #{tpu_custom_call.1} parent=5 // pred_region
        %s213 = ssub.s32 %s13, 1
        %s214 = smul.u32 8, %s23
        %p215 = scmp.lt.s32.totalorder %s22, 1
        %s216 = scalar_select %p215, %s22, 1
        %p217 = scmp.lt.s32.totalorder %s214, 7
        %s218 = scalar_select %p217, %s214, 7
        %s219 = smul.addr %s218, 2
        %s220 = smul.addr %s216, 16
        %s221 = sadd.s32 %s219, %s220
        %s222 = smul.addr %s221, 8
        %s223 = scalar_lea.vmem %s0, %s222
        %p224 = pneg %p53
        %p225 = pneg %p50
        %p226 = scmp.lt.s32.totalorder %s22, 1
        %s227 = scalar_select %p226, %s22, 1
        %s228 = smul.addr %s227, 48
        %s229 = smul.addr %s228, 8
        %s230 = scalar_lea.vmem %s1, %s229
        %p231 = pneg %p79
        %p232 = pneg %p76
        %s233 = smul.u32 8, %s23
        %p234 = scmp.lt.s32.totalorder %s233, 7
        %s235 = scalar_select %p234, %s233, 7
        %s236 = smul.addr %s235, 8
        %s237 = scalar_lea.vmem %s2, %s236
        %p238 = pneg %p105
        %p239 = pneg %p102
        %p240 = pneg %p126
        %p241 = pneg %p123
        %p242 = pneg %p154
        %p243 = pneg %p151
        %s244 = sand.u32 %s141, 1
        %s245 = scalar_lea.sflag [#allocation3], %s244
        %s246 = sand.u32 %s141, 1
        %s247 = smul.addr %s246, 8
        %s248 = scalar_lea.vmem [#allocation2], %s247
        %s249 = smul.u32 8, %s23
        %p250 = scmp.lt.s32.totalorder %s22, 1
        %s251 = scalar_select %p250, %s22, 1
        %p252 = scmp.lt.s32.totalorder %s249, 7
        %s253 = scalar_select %p252, %s249, 7
        %s254 = smul.addr %s253, 2
        %s255 = smul.addr %s251, 16
        %s256 = sadd.s32 %s254, %s255
        %s257 = smul.addr %s256, 8
        %s258 = scalar_lea.vmem %s0, %s257
        %s259 = smul.u32 8, %s23
        %p260 = scmp.lt.s32.totalorder %s22, 1
        %s261 = scalar_select %p260, %s22, 1
        %s262 = smul.addr %s261, 48
        %s263 = smul.addr %s262, 8
        %s264 = scalar_lea.vmem %s1, %s263
        %s265 = smul.u32 8, %s23
        %p266 = scmp.lt.s32.totalorder %s265, 7
        %s267 = scalar_select %p266, %s265, 7
        %s268 = smul.addr %s267, 8
        %s269 = scalar_lea.vmem %s2, %s268
        %s270 = smul.u32 8, %s23
        %v271 = vld [vmem:[%s264] sm:$0xff]
        %v272 = vld [vmem:[%s264 + $0x8] sm:$0xff]
        %v273 = vld [vmem:[%s264 + $0x10] sm:$0xff]
        %v274 = vld [vmem:[%s264 + $0x18] sm:$0xff]
        %v275 = vld [vmem:[%s264 + $0x20] sm:$0xff]
        %v276 = vld [vmem:[%s264 + $0x28] sm:$0xff]
        %v277 = vld [vmem:[%s264 + $0x30] sm:$0xff]
        %v278 = vld [vmem:[%s264 + $0x38] sm:$0xff]
        %v279 = vld [vmem:[%s264 + $0x40] sm:$0xff]
        %v280 = vld [vmem:[%s264 + $0x48] sm:$0xff]
        %v281 = vld [vmem:[%s264 + $0x50] sm:$0xff]
        %v282 = vld [vmem:[%s264 + $0x58] sm:$0xff]
        %v283 = vld [vmem:[%s264 + $0x60] sm:$0xff]
        %v284 = vld [vmem:[%s264 + $0x68] sm:$0xff]
        %v285 = vld [vmem:[%s264 + $0x70] sm:$0xff]
        %v286 = vld [vmem:[%s264 + $0x78] sm:$0xff]
        %v287 = vld [vmem:[%s264 + $0x80] sm:$0xff]
        %v288 = vld [vmem:[%s264 + $0x88] sm:$0xff]
        %v289 = vld [vmem:[%s264 + $0x90] sm:$0xff]
        %v290 = vld [vmem:[%s264 + $0x98] sm:$0xff]
        %v291 = vld [vmem:[%s264 + $0xa0] sm:$0xff]
        %v292 = vld [vmem:[%s264 + $0xa8] sm:$0xff]
        %v293 = vld [vmem:[%s264 + $0xb0] sm:$0xff]
        %v294 = vld [vmem:[%s264 + $0xb8] sm:$0xff]
        %v295 = vld [vmem:[%s264 + $0xc0] sm:$0xff]
        %v296 = vld [vmem:[%s264 + $0xc8] sm:$0xff]
        %v297 = vld [vmem:[%s264 + $0xd0] sm:$0xff]
        %v298 = vld [vmem:[%s264 + $0xd8] sm:$0xff]
        %v299 = vld [vmem:[%s264 + $0xe0] sm:$0xff]
        %v300 = vld [vmem:[%s264 + $0xe8] sm:$0xff]
        %v301 = vld [vmem:[%s264 + $0xf0] sm:$0xff]
        %v302 = vld [vmem:[%s264 + $0xf8] sm:$0xff]
        %v303 = vld [vmem:[%s264 + $0x100] sm:$0xff]
        %v304 = vld [vmem:[%s264 + $0x108] sm:$0xff]
        %v305 = vld [vmem:[%s264 + $0x110] sm:$0xff]
        %v306 = vld [vmem:[%s264 + $0x118] sm:$0xff]
        %v307 = vld [vmem:[%s264 + $0x120] sm:$0xff]
        %v308 = vld [vmem:[%s264 + $0x128] sm:$0xff]
        %v309 = vld [vmem:[%s264 + $0x130] sm:$0xff]
        %v310 = vld [vmem:[%s264 + $0x138] sm:$0xff]
        %v311 = vld [vmem:[%s264 + $0x140] sm:$0xff]
        %v312 = vld [vmem:[%s264 + $0x148] sm:$0xff]
        %v313 = vld [vmem:[%s264 + $0x150] sm:$0xff]
        %v314 = vld [vmem:[%s264 + $0x158] sm:$0xff]
        %v315 = vld [vmem:[%s264 + $0x160] sm:$0xff]
        %v316 = vld [vmem:[%s264 + $0x168] sm:$0xff]
        %v317 = vld [vmem:[%s264 + $0x170] sm:$0xff]
        %v318 = vld [vmem:[%s264 + $0x178] sm:$0xff]
        %v319 = vld [vmem:[%s269] sm:$0xff]
        %v320 = vld [vmem:[%s269 + $0x8] sm:$0xff]
        %v321 = vld [vmem:[%s269 + $0x10] sm:$0xff]
        %v322 = vld [vmem:[%s269 + $0x18] sm:$0xff]
        %v323 = vld [vmem:[%s269 + $0x20] sm:$0xff]
        %v324 = vld [vmem:[%s269 + $0x28] sm:$0xff]
        %v325 = vld [vmem:[%s269 + $0x30] sm:$0xff]
        %v326 = vld [vmem:[%s269 + $0x38] sm:$0xff]
        %327 = vmatprep.subr.mxu0 %v272
        %328 = vmatpush1.msra.mxu0 %v271
        %329 = vmatprep.subr.mxu0 %v275
        %330 = vmatpush1.msra.mxu0 %v274
        %331 = vmatprep.subr.mxu0 %v278
        %332 = vmatpush1.msra.mxu0 %v277
        %333 = vmatprep.subr.mxu0 %v281
        %334 = vmatpush1.msra.mxu0 %v280
        %335 = vmatprep.subr.mxu0 %v284
        %336 = vmatpush1.msra.mxu0 %v283
        %337 = vmatprep.subr.mxu0 %v287
        %338 = vmatpush1.msra.mxu0 %v286
        %339 = vmatprep.subr.mxu0 %v290
        %340 = vmatpush1.msra.mxu0 %v289
        %341 = vmatprep.subr.mxu0 %v293
        %342 = vmatpush1.msra.mxu0 %v292
        %343 = vmatprep.subr.mxu0 %v296
        %344 = vmatpush1.msra.mxu0 %v295
        %345 = vmatprep.subr.mxu0 %v299
        %346 = vmatpush1.msra.mxu0 %v298
        %347 = vmatprep.subr.mxu0 %v302
        %348 = vmatpush1.msra.mxu0 %v301
        %349 = vmatprep.subr.mxu0 %v305
        %350 = vmatpush1.msra.mxu0 %v304
        %351 = vmatprep.subr.mxu0 %v308
        %352 = vmatpush1.msra.mxu0 %v307
        %353 = vmatprep.subr.mxu0 %v311
        %354 = vmatpush1.msra.mxu0 %v310
        %355 = vmatprep.subr.mxu0 %v314
        %356 = vmatpush1.msra.mxu0 %v313
        %357 = vmatprep.subr.mxu0 %v317
        %358 = vmatpush1.msra.mxu0 %v316
        %359 = vmatprep.subr.mxu0 0.0
        %360 = vmatpush1.msra.mxu0 0.0
        %361 = vmatprep.subr.mxu0 0.0
        %362 = vmatpush1.msra.mxu0 0.0
        %363 = vmatprep.subr.mxu0 0.0
        %364 = vmatpush1.msra.mxu0 0.0
        %365 = vmatprep.subr.mxu0 0.0
        %366 = vmatpush1.msra.mxu0 0.0
        %367 = vmatprep.subr.mxu0 0.0
        %368 = vmatpush1.msra.mxu0 0.0
        %369 = vmatprep.subr.mxu0 0.0
        %370 = vmatpush1.msra.mxu0 0.0
        %371 = vmatprep.subr.mxu0 0.0
        %372 = vmatpush1.msra.mxu0 0.0
        %373 = vmatprep.subr.mxu0 0.0
        %374 = vmatpush1.msra.mxu0 0.0
        %375 = vmatprep.subr.mxu0 0.0
        %376 = vmatpush1.msra.mxu0 0.0
        %377 = vmatprep.subr.mxu0 0.0
        %378 = vmatpush1.msra.mxu0 0.0
        %379 = vmatprep.subr.mxu0 0.0
        %380 = vmatpush1.msra.mxu0 0.0
        %381 = vmatprep.subr.mxu0 0.0
        %382 = vmatpush1.msra.mxu0 0.0
        %383 = vmatprep.subr.mxu0 0.0
        %384 = vmatpush1.msra.mxu0 0.0
        %385 = vmatprep.subr.mxu0 0.0
        %386 = vmatpush1.msra.mxu0 0.0
        %387 = vmatprep.subr.mxu0 0.0
        %388 = vmatpush1.msra.mxu0 0.0
        %389 = vmatprep.subr.mxu0 0.0
        %390 = vmatpush1.msra.mxu0 0.0
        %391 = vmatprep.mubr.f32.mxu0 0.0
        %392 = vmatmul.mubr.f32.gmra.mrb[0].mxu0 %v319
        %v393 = vpop.f32.mrb[0].mxu0
        %v394 = vadd.f32 0.0, %v393
        %v395 = vpop.f32.mrb[0].mxu0
        %v396 = vadd.f32 0.0, %v395
        %397 = vmatprep.mubr.f32.mxu0 0.0
        %398 = vmatmul.mubr.f32.gmra.mrb[0].mxu0 %v320
        %v399 = vpop.f32.mrb[0].mxu0
        %v400 = vadd.f32 0.0, %v399
        %v401 = vpop.f32.mrb[0].mxu0
        %v402 = vadd.f32 0.0, %v401
        %403 = vmatprep.mubr.f32.mxu0 0.0
        %404 = vmatmul.mubr.f32.gmra.mrb[0].mxu0 %v321
        %v405 = vpop.f32.mrb[0].mxu0
        %v406 = vadd.f32 0.0, %v405
        %v407 = vpop.f32.mrb[0].mxu0
        %v408 = vadd.f32 0.0, %v407
        %409 = vmatprep.mubr.f32.mxu0 0.0
        %410 = vmatmul.mubr.f32.gmra.mrb[0].mxu0 %v322
        %v411 = vpop.f32.mrb[0].mxu0
        %v412 = vadd.f32 0.0, %v411
        %v413 = vpop.f32.mrb[0].mxu0
        %v414 = vadd.f32 0.0, %v413
        %415 = vmatprep.mubr.f32.mxu0 0.0
        %416 = vmatmul.mubr.f32.gmra.mrb[0].mxu0 %v323
        %v417 = vpop.f32.mrb[0].mxu0
        %v418 = vadd.f32 0.0, %v417
        %v419 = vpop.f32.mrb[0].mxu0
        %v420 = vadd.f32 0.0, %v419
        %421 = vmatprep.mubr.f32.mxu0 0.0
        %422 = vmatmul.mubr.f32.gmra.mrb[0].mxu0 %v324
        %v423 = vpop.f32.mrb[0].mxu0
        %v424 = vadd.f32 0.0, %v423
        %v425 = vpop.f32.mrb[0].mxu0
        %v426 = vadd.f32 0.0, %v425
        %427 = vmatprep.mubr.f32.mxu0 0.0
        %428 = vmatmul.mubr.f32.gmra.mrb[0].mxu0 %v325
        %v429 = vpop.f32.mrb[0].mxu0
        %v430 = vadd.f32 0.0, %v429
        %v431 = vpop.f32.mrb[0].mxu0
        %v432 = vadd.f32 0.0, %v431
        %433 = vmatprep.mubr.f32.mxu0 0.0
        %434 = vmatmul.mubr.f32.gmra.mrb[0].mxu0 %v326
        %v435 = vpop.f32.mrb[0].mxu0
        %v436 = vadd.f32 0.0, %v435
        %v437 = vpop.f32.mrb[0].mxu0
        %v438 = vadd.f32 0.0, %v437
        %439 = vdwg.mxu0
        %440 = vmatprep.subr.mxu0 0.0
        %441 = vmatpush1.msra.mxu0 %v273
        %442 = vmatprep.subr.mxu0 0.0
        %443 = vmatpush1.msra.mxu0 %v276
        %444 = vmatprep.subr.mxu0 0.0
        %445 = vmatpush1.msra.mxu0 %v279
        %446 = vmatprep.subr.mxu0 0.0
        %447 = vmatpush1.msra.mxu0 %v282
        %448 = vmatprep.subr.mxu0 0.0
        %449 = vmatpush1.msra.mxu0 %v285
        %450 = vmatprep.subr.mxu0 0.0
        %451 = vmatpush1.msra.mxu0 %v288
        %452 = vmatprep.subr.mxu0 0.0
        %453 = vmatpush1.msra.mxu0 %v291
        %454 = vmatprep.subr.mxu0 0.0
        %455 = vmatpush1.msra.mxu0 %v294
        %456 = vmatprep.subr.mxu0 0.0
        %457 = vmatpush1.msra.mxu0 %v297
        %458 = vmatprep.subr.mxu0 0.0
        %459 = vmatpush1.msra.mxu0 %v300
        %460 = vmatprep.subr.mxu0 0.0
        %461 = vmatpush1.msra.mxu0 %v303
        %462 = vmatprep.subr.mxu0 0.0
        %463 = vmatpush1.msra.mxu0 %v306
        %464 = vmatprep.subr.mxu0 0.0
        %465 = vmatpush1.msra.mxu0 %v309
        %466 = vmatprep.subr.mxu0 0.0
        %467 = vmatpush1.msra.mxu0 %v312
        %468 = vmatprep.subr.mxu0 0.0
        %469 = vmatpush1.msra.mxu0 %v315
        %470 = vmatprep.subr.mxu0 0.0
        %471 = vmatpush1.msra.mxu0 %v318
        %472 = vmatprep.subr.mxu0 0.0
        %473 = vmatpush1.msra.mxu0 0.0
        %474 = vmatprep.subr.mxu0 0.0
        %475 = vmatpush1.msra.mxu0 0.0
        %476 = vmatprep.subr.mxu0 0.0
        %477 = vmatpush1.msra.mxu0 0.0
        %478 = vmatprep.subr.mxu0 0.0
        %479 = vmatpush1.msra.mxu0 0.0
        %480 = vmatprep.subr.mxu0 0.0
        %481 = vmatpush1.msra.mxu0 0.0
        %482 = vmatprep.subr.mxu0 0.0
        %483 = vmatpush1.msra.mxu0 0.0
        %484 = vmatprep.subr.mxu0 0.0
        %485 = vmatpush1.msra.mxu0 0.0
        %486 = vmatprep.subr.mxu0 0.0
        %487 = vmatpush1.msra.mxu0 0.0
        %488 = vmatprep.subr.mxu0 0.0
        %489 = vmatpush1.msra.mxu0 0.0
        %490 = vmatprep.subr.mxu0 0.0
        %491 = vmatpush1.msra.mxu0 0.0
        %492 = vmatprep.subr.mxu0 0.0
        %493 = vmatpush1.msra.mxu0 0.0
        %494 = vmatprep.subr.mxu0 0.0
        %495 = vmatpush1.msra.mxu0 0.0
        %496 = vmatprep.subr.mxu0 0.0
        %497 = vmatpush1.msra.mxu0 0.0
        %498 = vmatprep.subr.mxu0 0.0
        %499 = vmatpush1.msra.mxu0 0.0
        %500 = vmatprep.subr.mxu0 0.0
        %501 = vmatpush1.msra.mxu0 0.0
        %502 = vmatprep.subr.mxu0 0.0
        %503 = vmatpush1.msra.mxu0 0.0
        %504 = vmatprep.mubr.f32.mxu0 0.0
        %505 = vmatmul.mubr.f32.gmra.mrb[0].mxu0 %v319
        %v506 = vpop.f32.mrb[0].mxu0
        %v507 = vadd.f32 0.0, %v506
        %v508 = vpop.f32.mrb[0].mxu0
        %509 = vmatprep.mubr.f32.mxu0 0.0
        %510 = vmatmul.mubr.f32.gmra.mrb[0].mxu0 %v320
        %v511 = vpop.f32.mrb[0].mxu0
        %v512 = vadd.f32 0.0, %v511
        %v513 = vpop.f32.mrb[0].mxu0
        %514 = vmatprep.mubr.f32.mxu0 0.0
        %515 = vmatmul.mubr.f32.gmra.mrb[0].mxu0 %v321
        %v516 = vpop.f32.mrb[0].mxu0
        %v517 = vadd.f32 0.0, %v516
        %v518 = vpop.f32.mrb[0].mxu0
        %519 = vmatprep.mubr.f32.mxu0 0.0
        %520 = vmatmul.mubr.f32.gmra.mrb[0].mxu0 %v322
        %v521 = vpop.f32.mrb[0].mxu0
        %v522 = vadd.f32 0.0, %v521
        %v523 = vpop.f32.mrb[0].mxu0
        %524 = vmatprep.mubr.f32.mxu0 0.0
        %525 = vmatmul.mubr.f32.gmra.mrb[0].mxu0 %v323
        %v526 = vpop.f32.mrb[0].mxu0
        %v527 = vadd.f32 0.0, %v526
        %v528 = vpop.f32.mrb[0].mxu0
        %529 = vmatprep.mubr.f32.mxu0 0.0
        %530 = vmatmul.mubr.f32.gmra.mrb[0].mxu0 %v324
        %v531 = vpop.f32.mrb[0].mxu0
        %v532 = vadd.f32 0.0, %v531
        %v533 = vpop.f32.mrb[0].mxu0
        %534 = vmatprep.mubr.f32.mxu0 0.0
        %535 = vmatmul.mubr.f32.gmra.mrb[0].mxu0 %v325
        %v536 = vpop.f32.mrb[0].mxu0
        %v537 = vadd.f32 0.0, %v536
        %v538 = vpop.f32.mrb[0].mxu0
        %539 = vmatprep.mubr.f32.mxu0 0.0
        %540 = vmatmul.mubr.f32.gmra.mrb[0].mxu0 %v326
        %v541 = vpop.f32.mrb[0].mxu0
        %v542 = vadd.f32 0.0, %v541
        %v543 = vpop.f32.mrb[0].mxu0
        %544 = vdwg.mxu0
        %v545 = vld [vmem:[%s3] sm:$0xff]
        %v546 = vld [vmem:[%s3 + $0x8] sm:$0xff]
        %v547 = vld [vmem:[%s3 + $0x10] sm:$0xff]
        %v548 = vld [vmem:[%s3 + $0x18] sm:$0xff]
        %v549 = vld [vmem:[%s3 + $0x20] sm:$0xff]
        %v550 = vld [vmem:[%s3 + $0x28] sm:$0xff]
        %v551 = vld [vmem:[%s3 + $0x30] sm:$0xff]
        %v552 = vld [vmem:[%s3 + $0x38] sm:$0xff]
        %v553 = vld [vmem:[%s3 + $0x40] sm:$0xff]
        %v554 = vld [vmem:[%s3 + $0x48] sm:$0xff]
        %v555 = vld [vmem:[%s3 + $0x50] sm:$0xff]
        %v556 = vld [vmem:[%s3 + $0x58] sm:$0xff]
        %v557 = vld [vmem:[%s3 + $0x60] sm:$0xff]
        %v558 = vld [vmem:[%s3 + $0x68] sm:$0xff]
        %v559 = vld [vmem:[%s3 + $0x70] sm:$0xff]
        %v560 = vld [vmem:[%s3 + $0x78] sm:$0xff]
        %v561 = vld [vmem:[%s3 + $0x80] sm:$0xff]
        %v562 = vld [vmem:[%s3 + $0x88] sm:$0xff]
        %v563 = vld [vmem:[%s3 + $0x90] sm:$0xff]
        %v564 = vld [vmem:[%s3 + $0x98] sm:$0xff]
        %v565 = vld [vmem:[%s3 + $0xa0] sm:$0xff]
        %v566 = vld [vmem:[%s3 + $0xa8] sm:$0xff]
        %v567 = vld [vmem:[%s3 + $0xb0] sm:$0xff]
        %v568 = vld [vmem:[%s3 + $0xb8] sm:$0xff]
        %v569 = vld [vmem:[%s3 + $0xc0] sm:$0xff]
        %v570 = vld [vmem:[%s3 + $0xc8] sm:$0xff]
        %v571 = vld [vmem:[%s3 + $0xd0] sm:$0xff]
        %v572 = vld [vmem:[%s3 + $0xd8] sm:$0xff]
        %v573 = vld [vmem:[%s3 + $0xe0] sm:$0xff]
        %v574 = vld [vmem:[%s3 + $0xe8] sm:$0xff]
        %v575 = vld [vmem:[%s3 + $0xf0] sm:$0xff]
        %v576 = vld [vmem:[%s3 + $0xf8] sm:$0xff]
        %v577 = vld [vmem:[%s3 + $0x100] sm:$0xff]
        %v578 = vld [vmem:[%s3 + $0x108] sm:$0xff]
        %v579 = vld [vmem:[%s3 + $0x110] sm:$0xff]
        %v580 = vld [vmem:[%s3 + $0x118] sm:$0xff]
        %v581 = vld [vmem:[%s3 + $0x120] sm:$0xff]
        %v582 = vld [vmem:[%s3 + $0x128] sm:$0xff]
        %v583 = vld [vmem:[%s3 + $0x130] sm:$0xff]
        %v584 = vld [vmem:[%s3 + $0x138] sm:$0xff]
        %v585 = vld [vmem:[%s3 + $0x140] sm:$0xff]
        %v586 = vld [vmem:[%s3 + $0x148] sm:$0xff]
        %v587 = vld [vmem:[%s3 + $0x150] sm:$0xff]
        %v588 = vld [vmem:[%s3 + $0x158] sm:$0xff]
        %v589 = vld [vmem:[%s3 + $0x160] sm:$0xff]
        %v590 = vld [vmem:[%s3 + $0x168] sm:$0xff]
        %v591 = vld [vmem:[%s3 + $0x170] sm:$0xff]
        %v592 = vld [vmem:[%s3 + $0x178] sm:$0xff]
        %v593 = vld [vmem:[%s3 + $0x180] sm:$0xff]
        %v594 = vld [vmem:[%s3 + $0x188] sm:$0xff]
        %v595 = vld [vmem:[%s3 + $0x190] sm:$0xff]
        %v596 = vld [vmem:[%s3 + $0x198] sm:$0xff]
        %v597 = vld [vmem:[%s3 + $0x1a0] sm:$0xff]
        %v598 = vld [vmem:[%s3 + $0x1a8] sm:$0xff]
        %v599 = vld [vmem:[%s3 + $0x1b0] sm:$0xff]
        %v600 = vld [vmem:[%s3 + $0x1b8] sm:$0xff]
        %v601 = vld [vmem:[%s3 + $0x1c0] sm:$0xff]
        %v602 = vld [vmem:[%s3 + $0x1c8] sm:$0xff]
        %v603 = vld [vmem:[%s3 + $0x1d0] sm:$0xff]
        %v604 = vld [vmem:[%s3 + $0x1d8] sm:$0xff]
        %v605 = vld [vmem:[%s3 + $0x1e0] sm:$0xff]
        %v606 = vld [vmem:[%s3 + $0x1e8] sm:$0xff]
        %v607 = vld [vmem:[%s3 + $0x1f0] sm:$0xff]
        %v608 = vld [vmem:[%s3 + $0x1f8] sm:$0xff]
        %v609 = vld [vmem:[%s3 + $0x200] sm:$0xff]
        %v610 = vld [vmem:[%s3 + $0x208] sm:$0xff]
        %v611 = vld [vmem:[%s3 + $0x210] sm:$0xff]
        %v612 = vld [vmem:[%s3 + $0x218] sm:$0xff]
        %v613 = vld [vmem:[%s3 + $0x220] sm:$0xff]
        %v614 = vld [vmem:[%s3 + $0x228] sm:$0xff]
        %v615 = vld [vmem:[%s3 + $0x230] sm:$0xff]
        %v616 = vld [vmem:[%s3 + $0x238] sm:$0xff]
        %v617 = vld [vmem:[%s3 + $0x240] sm:$0xff]
        %v618 = vld [vmem:[%s3 + $0x248] sm:$0xff]
        %v619 = vld [vmem:[%s3 + $0x250] sm:$0xff]
        %v620 = vld [vmem:[%s3 + $0x258] sm:$0xff]
        %v621 = vld [vmem:[%s3 + $0x260] sm:$0xff]
        %v622 = vld [vmem:[%s3 + $0x268] sm:$0xff]
        %v623 = vld [vmem:[%s3 + $0x270] sm:$0xff]
        %v624 = vld [vmem:[%s3 + $0x278] sm:$0xff]
        %v625 = vld [vmem:[%s3 + $0x280] sm:$0xff]
        %v626 = vld [vmem:[%s3 + $0x288] sm:$0xff]
        %v627 = vld [vmem:[%s3 + $0x290] sm:$0xff]
        %v628 = vld [vmem:[%s3 + $0x298] sm:$0xff]
        %v629 = vld [vmem:[%s3 + $0x2a0] sm:$0xff]
        %v630 = vld [vmem:[%s3 + $0x2a8] sm:$0xff]
        %v631 = vld [vmem:[%s3 + $0x2b0] sm:$0xff]
        %v632 = vld [vmem:[%s3 + $0x2b8] sm:$0xff]
        %v633 = vld [vmem:[%s3 + $0x2c0] sm:$0xff]
        %v634 = vld [vmem:[%s3 + $0x2c8] sm:$0xff]
        %v635 = vld [vmem:[%s3 + $0x2d0] sm:$0xff]
        %v636 = vld [vmem:[%s3 + $0x2d8] sm:$0xff]
        %v637 = vld [vmem:[%s3 + $0x2e0] sm:$0xff]
        %v638 = vld [vmem:[%s3 + $0x2e8] sm:$0xff]
        %v639 = vld [vmem:[%s3 + $0x2f0] sm:$0xff]
        %v640 = vld [vmem:[%s3 + $0x2f8] sm:$0xff]
        %641 = vmatprep.subr.mxu0 %v546
        %642 = vmatpush1.msra.mxu0 %v545
        %643 = vmatprep.subr.mxu0 %v548
        %644 = vmatpush1.msra.mxu0 %v547
        %645 = vmatprep.subr.mxu0 %v550
        %646 = vmatpush1.msra.mxu0 %v549
        %647 = vmatprep.subr.mxu0 %v552
        %648 = vmatpush1.msra.mxu0 %v551
        %649 = vmatprep.subr.mxu0 %v554
        %650 = vmatpush1.msra.mxu0 %v553
        %651 = vmatprep.subr.mxu0 %v556
        %652 = vmatpush1.msra.mxu0 %v555
        %653 = vmatprep.subr.mxu0 %v558
        %654 = vmatpush1.msra.mxu0 %v557
        %655 = vmatprep.subr.mxu0 %v560
        %656 = vmatpush1.msra.mxu0 %v559
        %657 = vmatprep.subr.mxu0 %v562
        %658 = vmatpush1.msra.mxu0 %v561
        %659 = vmatprep.subr.mxu0 %v564
        %660 = vmatpush1.msra.mxu0 %v563
        %661 = vmatprep.subr.mxu0 %v566
        %662 = vmatpush1.msra.mxu0 %v565
        %663 = vmatprep.subr.mxu0 %v568
        %664 = vmatpush1.msra.mxu0 %v567
        %665 = vmatprep.subr.mxu0 %v570
        %666 = vmatpush1.msra.mxu0 %v569
        %667 = vmatprep.subr.mxu0 %v572
        %668 = vmatpush1.msra.mxu0 %v571
        %669 = vmatprep.subr.mxu0 %v574
        %670 = vmatpush1.msra.mxu0 %v573
        %671 = vmatprep.subr.mxu0 %v576
        %672 = vmatpush1.msra.mxu0 %v575
        %673 = vmatprep.subr.mxu0 %v578
        %674 = vmatpush1.msra.mxu0 %v577
        %675 = vmatprep.subr.mxu0 %v580
        %676 = vmatpush1.msra.mxu0 %v579
        %677 = vmatprep.subr.mxu0 %v582
        %678 = vmatpush1.msra.mxu0 %v581
        %679 = vmatprep.subr.mxu0 %v584
        %680 = vmatpush1.msra.mxu0 %v583
        %681 = vmatprep.subr.mxu0 %v586
        %682 = vmatpush1.msra.mxu0 %v585
        %683 = vmatprep.subr.mxu0 %v588
        %684 = vmatpush1.msra.mxu0 %v587
        %685 = vmatprep.subr.mxu0 %v590
        %686 = vmatpush1.msra.mxu0 %v589
        %687 = vmatprep.subr.mxu0 %v592
        %688 = vmatpush1.msra.mxu0 %v591
        %689 = vmatprep.subr.mxu0 %v594
        %690 = vmatpush1.msra.mxu0 %v593
        %691 = vmatprep.subr.mxu0 %v596
        %692 = vmatpush1.msra.mxu0 %v595
        %693 = vmatprep.subr.mxu0 %v598
        %694 = vmatpush1.msra.mxu0 %v597
        %695 = vmatprep.subr.mxu0 %v600
        %696 = vmatpush1.msra.mxu0 %v599
        %697 = vmatprep.subr.mxu0 %v602
        %698 = vmatpush1.msra.mxu0 %v601
        %699 = vmatprep.subr.mxu0 %v604
        %700 = vmatpush1.msra.mxu0 %v603
        %701 = vmatprep.subr.mxu0 %v606
        %702 = vmatpush1.msra.mxu0 %v605
        %703 = vmatprep.subr.mxu0 %v608
        %704 = vmatpush1.msra.mxu0 %v607
        %705 = vmatprep.mubr.f32.mxu0 %v396
        %706 = vmatmul.mubr.f32.gmra.mrb[0].mxu0 %v394
        %v707 = vpop.f32.mrb[0].mxu0
        %v708 = vadd.f32 0.0, %v707
        %v709 = vpop.f32.mrb[0].mxu0
        %v710 = vadd.f32 0.0, %v709
        %711 = vmatprep.mubr.f32.mxu0 %v402
        %712 = vmatmul.mubr.f32.gmra.mrb[0].mxu0 %v400
        %v713 = vpop.f32.mrb[0].mxu0
        %v714 = vadd.f32 0.0, %v713
        %v715 = vpop.f32.mrb[0].mxu0
        %v716 = vadd.f32 0.0, %v715
        %717 = vmatprep.mubr.f32.mxu0 %v408
        %718 = vmatmul.mubr.f32.gmra.mrb[0].mxu0 %v406
        %v719 = vpop.f32.mrb[0].mxu0
        %v720 = vadd.f32 0.0, %v719
        %v721 = vpop.f32.mrb[0].mxu0
        %v722 = vadd.f32 0.0, %v721
        %723 = vmatprep.mubr.f32.mxu0 %v414
        %724 = vmatmul.mubr.f32.gmra.mrb[0].mxu0 %v412
        %v725 = vpop.f32.mrb[0].mxu0
        %v726 = vadd.f32 0.0, %v725
        %v727 = vpop.f32.mrb[0].mxu0
        %v728 = vadd.f32 0.0, %v727
        %729 = vmatprep.mubr.f32.mxu0 %v420
        %730 = vmatmul.mubr.f32.gmra.mrb[0].mxu0 %v418
        %v731 = vpop.f32.mrb[0].mxu0
        %v732 = vadd.f32 0.0, %v731
        %v733 = vpop.f32.mrb[0].mxu0
        %v734 = vadd.f32 0.0, %v733
        %735 = vmatprep.mubr.f32.mxu0 %v426
        %736 = vmatmul.mubr.f32.gmra.mrb[0].mxu0 %v424
        %v737 = vpop.f32.mrb[0].mxu0
        %v738 = vadd.f32 0.0, %v737
        %v739 = vpop.f32.mrb[0].mxu0
        %v740 = vadd.f32 0.0, %v739
        %741 = vmatprep.mubr.f32.mxu0 %v432
        %742 = vmatmul.mubr.f32.gmra.mrb[0].mxu0 %v430
        %v743 = vpop.f32.mrb[0].mxu0
        %v744 = vadd.f32 0.0, %v743
        %v745 = vpop.f32.mrb[0].mxu0
        %v746 = vadd.f32 0.0, %v745
        %747 = vmatprep.mubr.f32.mxu0 %v438
        %748 = vmatmul.mubr.f32.gmra.mrb[0].mxu0 %v436
        %v749 = vpop.f32.mrb[0].mxu0
        %v750 = vadd.f32 0.0, %v749
        %v751 = vpop.f32.mrb[0].mxu0
        %v752 = vadd.f32 0.0, %v751
        %753 = vdwg.mxu0
        %754 = vmatprep.subr.mxu0 %v610
        %755 = vmatpush1.msra.mxu0 %v609
        %756 = vmatprep.subr.mxu0 %v612
        %757 = vmatpush1.msra.mxu0 %v611
        %758 = vmatprep.subr.mxu0 %v614
        %759 = vmatpush1.msra.mxu0 %v613
        %760 = vmatprep.subr.mxu0 %v616
        %761 = vmatpush1.msra.mxu0 %v615
        %762 = vmatprep.subr.mxu0 %v618
        %763 = vmatpush1.msra.mxu0 %v617
        %764 = vmatprep.subr.mxu0 %v620
        %765 = vmatpush1.msra.mxu0 %v619
        %766 = vmatprep.subr.mxu0 %v622
        %767 = vmatpush1.msra.mxu0 %v621
        %768 = vmatprep.subr.mxu0 %v624
        %769 = vmatpush1.msra.mxu0 %v623
        %770 = vmatprep.subr.mxu0 %v626
        %771 = vmatpush1.msra.mxu0 %v625
        %772 = vmatprep.subr.mxu0 %v628
        %773 = vmatpush1.msra.mxu0 %v627
        %774 = vmatprep.subr.mxu0 %v630
        %775 = vmatpush1.msra.mxu0 %v629
        %776 = vmatprep.subr.mxu0 %v632
        %777 = vmatpush1.msra.mxu0 %v631
        %778 = vmatprep.subr.mxu0 %v634
        %779 = vmatpush1.msra.mxu0 %v633
        %780 = vmatprep.subr.mxu0 %v636
        %781 = vmatpush1.msra.mxu0 %v635
        %782 = vmatprep.subr.mxu0 %v638
        %783 = vmatpush1.msra.mxu0 %v637
        %784 = vmatprep.subr.mxu0 %v640
        %785 = vmatpush1.msra.mxu0 %v639
        %786 = vmatprep.subr.mxu0 0.0
        %787 = vmatpush1.msra.mxu0 0.0
        %788 = vmatprep.subr.mxu0 0.0
        %789 = vmatpush1.msra.mxu0 0.0
        %790 = vmatprep.subr.mxu0 0.0
        %791 = vmatpush1.msra.mxu0 0.0
        %792 = vmatprep.subr.mxu0 0.0
        %793 = vmatpush1.msra.mxu0 0.0
        %794 = vmatprep.subr.mxu0 0.0
        %795 = vmatpush1.msra.mxu0 0.0
        %796 = vmatprep.subr.mxu0 0.0
        %797 = vmatpush1.msra.mxu0 0.0
        %798 = vmatprep.subr.mxu0 0.0
        %799 = vmatpush1.msra.mxu0 0.0
        %800 = vmatprep.subr.mxu0 0.0
        %801 = vmatpush1.msra.mxu0 0.0
        %802 = vmatprep.subr.mxu0 0.0
        %803 = vmatpush1.msra.mxu0 0.0
        %804 = vmatprep.subr.mxu0 0.0
        %805 = vmatpush1.msra.mxu0 0.0
        %806 = vmatprep.subr.mxu0 0.0
        %807 = vmatpush1.msra.mxu0 0.0
        %808 = vmatprep.subr.mxu0 0.0
        %809 = vmatpush1.msra.mxu0 0.0
        %810 = vmatprep.subr.mxu0 0.0
        %811 = vmatpush1.msra.mxu0 0.0
        %812 = vmatprep.subr.mxu0 0.0
        %813 = vmatpush1.msra.mxu0 0.0
        %814 = vmatprep.subr.mxu0 0.0
        %815 = vmatpush1.msra.mxu0 0.0
        %816 = vmatprep.subr.mxu0 0.0
        %817 = vmatpush1.msra.mxu0 0.0
        %818 = vmatprep.mubr.f32.mxu0 0.0
        %819 = vmatmul.mubr.f32.gmra.mrb[0].mxu0 %v507
        %v820 = vpop.f32.mrb[0].mxu0
        %v821 = vadd.f32 %v708, %v820
        %v822 = vpop.f32.mrb[0].mxu0
        %v823 = vadd.f32 %v710, %v822
        %824 = vmatprep.mubr.f32.mxu0 0.0
        %825 = vmatmul.mubr.f32.gmra.mrb[0].mxu0 %v512
        %v826 = vpop.f32.mrb[0].mxu0
        %v827 = vadd.f32 %v714, %v826
        %v828 = vpop.f32.mrb[0].mxu0
        %v829 = vadd.f32 %v716, %v828
        %830 = vmatprep.mubr.f32.mxu0 0.0
        %831 = vmatmul.mubr.f32.gmra.mrb[0].mxu0 %v517
        %v832 = vpop.f32.mrb[0].mxu0
        %v833 = vadd.f32 %v720, %v832
        %v834 = vpop.f32.mrb[0].mxu0
        %v835 = vadd.f32 %v722, %v834
        %836 = vmatprep.mubr.f32.mxu0 0.0
        %837 = vmatmul.mubr.f32.gmra.mrb[0].mxu0 %v522
        %v838 = vpop.f32.mrb[0].mxu0
        %v839 = vadd.f32 %v726, %v838
        %v840 = vpop.f32.mrb[0].mxu0
        %v841 = vadd.f32 %v728, %v840
        %842 = vmatprep.mubr.f32.mxu0 0.0
        %843 = vmatmul.mubr.f32.gmra.mrb[0].mxu0 %v527
        %v844 = vpop.f32.mrb[0].mxu0
        %v845 = vadd.f32 %v732, %v844
        %v846 = vpop.f32.mrb[0].mxu0
        %v847 = vadd.f32 %v734, %v846
        %848 = vmatprep.mubr.f32.mxu0 0.0
        %849 = vmatmul.mubr.f32.gmra.mrb[0].mxu0 %v532
        %v850 = vpop.f32.mrb[0].mxu0
        %v851 = vadd.f32 %v738, %v850
        %v852 = vpop.f32.mrb[0].mxu0
        %v853 = vadd.f32 %v740, %v852
        %854 = vmatprep.mubr.f32.mxu0 0.0
        %855 = vmatmul.mubr.f32.gmra.mrb[0].mxu0 %v537
        %v856 = vpop.f32.mrb[0].mxu0
        %v857 = vadd.f32 %v744, %v856
        %v858 = vpop.f32.mrb[0].mxu0
        %v859 = vadd.f32 %v746, %v858
        %860 = vmatprep.mubr.f32.mxu0 0.0
        %861 = vmatmul.mubr.f32.gmra.mrb[0].mxu0 %v542
        %v862 = vpop.f32.mrb[0].mxu0
        %v863 = vadd.f32 %v750, %v862
        %v864 = vpop.f32.mrb[0].mxu0
        %v865 = vadd.f32 %v752, %v864
        %866 = vdwg.mxu0
        %v867 = vld [vmem:[%s258] sm:$0xff]
        %v868 = vld [vmem:[%s258 + $0x8] sm:$0xff]
        %v869 = vld [vmem:[%s258 + $0x10] sm:$0xff]
        %v870 = vld [vmem:[%s258 + $0x18] sm:$0xff]
        %v871 = vld [vmem:[%s258 + $0x20] sm:$0xff]
        %v872 = vld [vmem:[%s258 + $0x28] sm:$0xff]
        %v873 = vld [vmem:[%s258 + $0x30] sm:$0xff]
        %v874 = vld [vmem:[%s258 + $0x38] sm:$0xff]
        %v875 = vld [vmem:[%s258 + $0x40] sm:$0xff]
        %v876 = vld [vmem:[%s258 + $0x48] sm:$0xff]
        %v877 = vld [vmem:[%s258 + $0x50] sm:$0xff]
        %v878 = vld [vmem:[%s258 + $0x58] sm:$0xff]
        %v879 = vld [vmem:[%s258 + $0x60] sm:$0xff]
        %v880 = vld [vmem:[%s258 + $0x68] sm:$0xff]
        %v881 = vld [vmem:[%s258 + $0x70] sm:$0xff]
        %v882 = vld [vmem:[%s258 + $0x78] sm:$0xff]
        %v883 = vsub.f32 %v867, %v821
        %v884 = vsub.f32 %v868, %v823
        %v885 = vsub.f32 %v869, %v827
        %v886 = vsub.f32 %v870, %v829
        %v887 = vsub.f32 %v871, %v833
        %v888 = vsub.f32 %v872, %v835
        %v889 = vsub.f32 %v873, %v839
        %v890 = vsub.f32 %v874, %v841
        %v891 = vsub.f32 %v875, %v845
        %v892 = vsub.f32 %v876, %v847
        %v893 = vsub.f32 %v877, %v851
        %v894 = vsub.f32 %v878, %v853
        %v895 = vsub.f32 %v879, %v857
        %v896 = vsub.f32 %v880, %v859
        %v897 = vsub.f32 %v881, %v863
        %v898 = vsub.f32 %v882, %v865
        %v899 = vand.u32 2147483647, %v883
        %v900 = vand.u32 2147483647, %v884
        %v901 = vand.u32 2147483647, %v885
        %v902 = vand.u32 2147483647, %v886
        %v903 = vand.u32 2147483647, %v887
        %v904 = vand.u32 2147483647, %v888
        %v905 = vand.u32 2147483647, %v889
        %v906 = vand.u32 2147483647, %v890
        %v907 = vand.u32 2147483647, %v891
        %v908 = vand.u32 2147483647, %v892
        %v909 = vand.u32 2147483647, %v893
        %v910 = vand.u32 2147483647, %v894
        %v911 = vand.u32 2147483647, %v895
        %v912 = vand.u32 2147483647, %v896
        %v913 = vand.u32 2147483647, %v897
        %v914 = vand.u32 2147483647, %v898
        %vm915 = vcmask 523264
        %v916 = vsel %vm915, %v900, 0.0
        %v917 = vadd.f32 %v899, %v916
        %v918 = vadd.f32 %v917, %v901
        %v919 = vsel %vm915, %v902, 0.0
        %v920 = vadd.f32 %v918, %v919
        %v921 = vadd.f32 %v920, %v903
        %v922 = vsel %vm915, %v904, 0.0
        %v923 = vadd.f32 %v921, %v922
        %v924 = vadd.f32 %v923, %v905
        %v925 = vsel %vm915, %v906, 0.0
        %v926 = vadd.f32 %v924, %v925
        %v927 = vadd.f32 %v926, %v907
        %v928 = vsel %vm915, %v908, 0.0
        %v929 = vadd.f32 %v927, %v928
        %v930 = vadd.f32 %v929, %v909
        %v931 = vsel %vm915, %v910, 0.0
        %v932 = vadd.f32 %v930, %v931
        %v933 = vadd.f32 %v932, %v911
        %v934 = vsel %vm915, %v912, 0.0
        %v935 = vadd.f32 %v933, %v934
        %v936 = vadd.f32 %v935, %v913
        %v937 = vsel %vm915, %v914, 0.0
        %v938 = vadd.f32 %v936, %v937
        %939 = vadd.xlane.f32.xlu0 %v938
        %v940 = vpop.xlane.xlu0 %939
        %v941 = vrot.slane %v940, 4
        %v942 = vadd.f32 %v940, %v941
        %v943 = vrot.slane %v942, 2
        %v944 = vadd.f32 %v942, %v943
        %v945 = vrot.slane %v944, 1
        %v946 = vadd.f32 %v944, %v945
        %s947 = vtos %v946
        %v948 = vstv %s947
        %949 = vst [vmem:[%s248] sm:$0xff] %v948
        %s950 = sand.u32 %s141, 1
        %s951 = scalar_lea.sflag [#allocation3], %s950
        %s952 = sand.u32 %s141, 1
        %s953 = smul.addr %s952, 8
        %s954 = scalar_lea.vmem [#allocation2], %s953
        // Predicated region
        $region37: #{tpu_custom_call.1} parent=35 // pred_check
          %p955 = pneg %p151
        $region38: #{tpu_custom_call.1} parent=35 // pred_check_branch
          %957 = sbr.rel (%p955) target = $region40
        $region39: #{tpu_custom_call.1} parent=35 // pred_region
          %s959 = ssub.s32 128, 128
          %960 = vsyncadd %s951, %s959
          %s961 = sadd.s32 %s23, %s22
          %s962 = smul.addr %s961, 128
          %s963 = scalar_lea.hbm %s4, %s962
          %s965 = sshll.u32 %s954, 4
          %s966 = int_to_ptr.vmem [resolvable:$true] %s965
          %968 = dma.vmem_to_hbm [thread:$0]  %s966, 128, %s963, %s951
        $region40: #{tpu_custom_call.1} parent=35 // pred_fallthru
          _
      $region36: #{tpu_custom_call.1} parent=5 // pred_fallthru
        _
      %p969 = scmp.le.s32.totalorder 2, %s13
      // Predicated region
      $region41: #{tpu_custom_call.1} parent=5 // pred_check
        %p970 = pneg %p969
      $region42: #{tpu_custom_call.1} parent=5 // pred_check_branch
        %972 = sbr.rel (%p970) target = $region44
      $region43: #{tpu_custom_call.1} parent=5 // pred_region
        %s973 = ssub.s32 %s13, 2
        // Predicated region
        $region45: #{tpu_custom_call.1} parent=43 // pred_check
          %p974 = pneg %p157
        $region46: #{tpu_custom_call.1} parent=43 // pred_check_branch
          %976 = sbr.rel (%p974) target = $region48
        $region47: #{tpu_custom_call.1} parent=43 // pred_region
          %s977 = sand.u32 %s142, 1
          %s978 = scalar_lea.sflag [#allocation3], %s977
          %s979 = sand.u32 %s142, 1
          %s980 = smul.addr %s979, 8
          %s981 = scalar_lea.vmem [#allocation2], %s980
          %982 = dma.done %s978, 128
        $region48: #{tpu_custom_call.1} parent=43 // pred_fallthru
          _
      $region44: #{tpu_custom_call.1} parent=5 // pred_fallthru
        _
    $region6: #{tpu_custom_call.1} parent=1 // loop_footer
      %s17 = sadd.s32 1, %s13
    $region7: #{tpu_custom_call.1} parent=1 // loop_footer_branch
      %12 = sbr.rel target = $region3
    $region8: #{tpu_custom_call.1} parent=1 // loop_exit
      _
    %983 = vsyncpa [#allocation3], 1
    %s984 = scalar_lea.sflag [#allocation3], 1
    %985 = vsyncpa %s984, 1

</llo_original>
